<compile_context>
chip_gen: v6e
topology: v6e:2x2x1
jax: 0.10.0
libtpu: 0.0.40
codegen_flags: <defaults>
</compile_context>

<pallas_src>
import math
from functools import partial

import jax
import jax.numpy as jnp
from jax.experimental import pallas as pl
from jax.experimental.pallas import tpu as pltpu


# ----------------------------- helpers --------------------------------------

def _softshrink(v, lam):
    return jnp.where(v > lam, v - lam, jnp.where(v < -lam, v + lam, 0.0))


def _gelu(v, approx):
    if approx:
        # tanh approximation -> EUP (separate VLIW slot), cheap next to MXU work.
        c = math.sqrt(2.0 / math.pi)
        return 0.5 * v * (1.0 + jnp.tanh(c * (v + 0.044715 * (v * v * v))))
    # PyTorch nn.GELU() default = exact (erf-based) GELU.
    return 0.5 * v * (1.0 + jax.lax.erf(v * (1.0 / math.sqrt(2.0))))


def _round_up(n, m):
    return ((n + m - 1) // m) * m


def _detect_vmem_capacity_bytes(default=64 * 1024 * 1024):
    try:
        info = pltpu.get_tpu_info()
        return int(getattr(info, "vmem_capacity_bytes", default))
    except Exception:
        return default


def _detect_mxu_dim(default=128):
    # 128 is safe on every generation; bump to 256 only if we can see v6e/v7x.
    try:
        info = pltpu.get_tpu_info()
        name = str(getattr(info, "chip_version", "")).lower()
        if ("v6" in name) or ("v7" in name) or ("trillium" in name):
            return 256
    except Exception:
        pass
    return default


def _block_diag(m, g):
    """[nb, r, c] -> [nb//g, g*r, g*c] block-diagonal over groups of g blocks."""
    nb, r, c = m.shape
    G = nb // g
    m = m.reshape(G, g, r, c)
    eye = jnp.eye(g, dtype=m.dtype)
    return jnp.einsum('Girc,ij->Girjc', m, eye).reshape(G, g * r, g * c)


# ----------------------------- Pallas kernel --------------------------------

def afno_block_mlp_kernel(xr_ref, xi_ref, m1_ref, b1_ref, m2_ref, b2_ref,
                          or_ref, oi_ref, *, lam, kept_modes, w_f,
                          compute_dtype, approx_gelu):
    """One (mode-tile, block-group) step of the block-diagonal complex MLP.

    xr_ref/xi_ref : [g*bs,   tn]     Re / Im spectral activations (lane = mode)
    m1_ref        : [2g*bsf, 2g*bs]  fused block-diagonal complex weight (layer 1)
    b1_ref        : [2g*bsf, 1]      stacked [b1r; b1i]
    m2_ref        : [2g*bs,  2g*bsf] fused block-diagonal complex weight (layer 2)
    b2_ref        : [2g*bs,  1]      stacked [b2r; b2i]
    or_ref/oi_ref : [g*bs,   tn]     Re / Im output after softshrink (+ mask)
    """
    rows = xr_ref.shape[0]

    # Stack [Re; Im] along sublanes and cast in VMEM (no extra HBM pass).
    x = jnp.concatenate([xr_ref[...], xi_ref[...]], axis=0).astype(compute_dtype)

    # Layer 1: one fused real matmul == the packed complex block matmuls.
    h = jnp.dot(m1_ref[...], x, preferred_element_type=jnp.float32) + b1_ref[...]
    h = _gelu(h, approx_gelu)

    # Layer 2 (cast back so bf16 stays on the MXU fast path).
    o = jnp.dot(m2_ref[...], h.astype(m2_ref.dtype),
                preferred_element_type=jnp.float32) + b2_ref[...]
    o = _softshrink(o, lam)

    # Hard-thresholding mask: one sublane row of iota/modulo, broadcast by where.
    # Elided at trace time when it cannot zero anything (fraction == 1).
    if kept_modes < w_f:
        tn = o.shape[-1]
        col = pl.program_id(0) * tn + jax.lax.broadcasted_iota(jnp.int32, (1, tn), 1)
        o = jnp.where((col % w_f) < kept_modes, o, 0.0)

    or_ref[...] = o[:rows].astype(or_ref.dtype)
    oi_ref[...] = o[rows:].astype(oi_ref.dtype)


# ----------------------------- wrapper ---------------------------------------

def afno2d_forward(x, params, *, num_blocks=8, sparsity_threshold=0.01,
                   hard_thresholding_fraction=1, hidden_size_factor=1,
                   compute_dtype=jnp.float32, approx_gelu=False,
                   mxu_pack_dim=None, tn_cap=16384):
    B, H, W, C = x.shape
    assert C % num_blocks == 0
    bs = C // num_blocks
    bsf = bs * hidden_size_factor

    # ---- generation-aware budgets -------------------------------------------
    vmem_cap = _detect_vmem_capacity_bytes()                   # 128 MiB v5e/v6e, 64 MiB v7x
    vmem_limit = max(32 * 2**20, min(int(vmem_cap * 0.75), 110 * 2**20))
    if mxu_pack_dim is None:
        mxu_pack_dim = _detect_mxu_dim()

    # ---- block packing factor g (largest divisor with g*2*bs <= MXU dim) -----
    g = 1
    for cand in range(1, num_blocks + 1):
        if num_blocks % cand == 0 and cand * 2 * bs <= mxu_pack_dim:
            g = cand
    G = num_blocks // g
    R, Rf = g * bs, g * bsf

    # ---- FFT glue: channels-first so the mode axis is last (lane-dense) ------
    # TODO(synk): rfft2/irfft2 have no Pallas equivalent; left to XLA.
    xt = jnp.transpose(x.astype(jnp.float32), (3, 0, 1, 2))            # [C,B,H,W]
    xf = jnp.fft.rfft2(xt, axes=(2, 3), norm='ortho')                  # [C,B,Hf,Wf]
    H_f, W_f = xf.shape[2], xf.shape[3]
    N = B * H_f * W_f
    xb = xf.reshape(G, R, N)                                           # [G, g*bs, N]

    # ---- mode-tile width from the VMEM budget (big, lane-dense tiles) --------
    out_dtype = compute_dtype
    out_bytes = jnp.dtype(out_dtype).itemsize
    per_col = 2 * R * (2 * 4 + 2 * out_bytes)          # dbl-buffered (Re+Im in, Re+Im out)
    tn_budget = max(512, (int(vmem_limit * 0.6) // per_col) // 128 * 128)
    tn_target = min(tn_budget, int(tn_cap), _round_up(N, 128))
    n_tiles = pl.cdiv(N, tn_target)
    tn = _round_up(pl.cdiv(N, n_tiles), 128)           # padding waste < 128 cols / tile
    Np = tn * n_tiles

    pad = ((0, 0), (0, 0), (0, Np - N))
    xr = jnp.pad(jnp.real(xb), pad)                                    # [G, g*bs, Np] f32
    xi = jnp.pad(jnp.imag(xb), pad)

    # ---- fused, block-diagonal complex weights (transposed: o = M @ [Re; Im]) -
    w1, b1, w2, b2 = params['w1'], params['b1'], params['w2'], params['b2']

    w1rT = jnp.swapaxes(w1[0], 1, 2)                                   # [nb, bsf, bs]
    w1iT = jnp.swapaxes(w1[1], 1, 2)
    A1, B1 = _block_diag(w1rT, g), _block_diag(w1iT, g)                # [G, Rf, R]
    m1 = jnp.concatenate([jnp.concatenate([A1, -B1], axis=2),
                          jnp.concatenate([B1,  A1], axis=2)], axis=1)  # [G, 2Rf, 2R]
    b1s = jnp.concatenate([b1[0].reshape(G, Rf),
                           b1[1].reshape(G, Rf)], axis=1)[..., None]    # [G, 2Rf, 1]

    w2rT = jnp.swapaxes(w2[0], 1, 2)                                   # [nb, bs, bsf]
    w2iT = jnp.swapaxes(w2[1], 1, 2)
    A2, B2 = _block_diag(w2rT, g), _block_diag(w2iT, g)                # [G, R, Rf]
    m2 = jnp.concatenate([jnp.concatenate([A2, -B2], axis=2),
                          jnp.concatenate([B2,  A2], axis=2)], axis=1)  # [G, 2R, 2Rf]
    b2s = jnp.concatenate([b2[0].reshape(G, R),
                           b2[1].reshape(G, R)], axis=1)[..., None]     # [G, 2R, 1]

    m1 = m1.astype(compute_dtype)
    m2 = m2.astype(compute_dtype)
    b1s = b1s.astype(jnp.float32)
    b2s = b2s.astype(jnp.float32)

    total_modes = H * W // 2 + 1
    kept_modes = int(total_modes * hard_thresholding_fraction)

    kern = partial(afno_block_mlp_kernel, lam=float(sparsity_threshold),
                   kept_modes=kept_modes, w_f=W_f, compute_dtype=compute_dtype,
                   approx_gelu=approx_gelu)

    out_re, out_im = pl.pallas_call(
        kern,
        out_shape=(jax.ShapeDtypeStruct((G, R, Np), out_dtype),
                   jax.ShapeDtypeStruct((G, R, Np), out_dtype)),
        grid_spec=pltpu.PrefetchScalarGridSpec(
            num_scalar_prefetch=0,
            grid=(n_tiles, G),                       # mode tiles outermost (megacore)
            in_specs=[
                pl.BlockSpec((None, R, tn),        lambda n, b: (b, 0, n)),  # Re
                pl.BlockSpec((None, R, tn),        lambda n, b: (b, 0, n)),  # Im
                pl.BlockSpec((None, 2 * Rf, 2 * R), lambda n, b: (b, 0, 0)),  # M1
                pl.BlockSpec((None, 2 * Rf, 1),     lambda n, b: (b, 0, 0)),  # b1
                pl.BlockSpec((None, 2 * R, 2 * Rf), lambda n, b: (b, 0, 0)),  # M2
                pl.BlockSpec((None, 2 * R, 1),      lambda n, b: (b, 0, 0)),  # b2
            ],
            out_specs=[
                pl.BlockSpec((None, R, tn), lambda n, b: (b, 0, n)),          # Re out
                pl.BlockSpec((None, R, tn), lambda n, b: (b, 0, n)),          # Im out
            ],
        ),
        compiler_params=pltpu.CompilerParams(
            dimension_semantics=("parallel", "parallel"),
            vmem_limit_bytes=int(vmem_limit)),
    )(xr, xi, m1, b1s, m2, b2s)

    # ---- back to complex spectrum and inverse FFT ----------------------------
    out_re = out_re[:, :, :N].astype(jnp.float32).reshape(C, B, H_f, W_f)
    out_im = out_im[:, :, :N].astype(jnp.float32).reshape(C, B, H_f, W_f)
    oc = jax.lax.complex(out_re, out_im)
    y = jnp.fft.irfft2(oc, s=(H, W), axes=(2, 3), norm='ortho')        # [C,B,H,W]
    return jnp.transpose(y, (1, 2, 3, 0)).astype(x.dtype)              # [B,H,W,C]


# ----------------------------- pure-JAX reference ----------------------------

def afno2d_reference(x, params, *, num_blocks=8, sparsity_threshold=0.01,
                     hard_thresholding_fraction=1, hidden_size_factor=1):
    B, H, W, C = x.shape
    bs = C // num_blocks
    xf = jnp.fft.rfft2(x.astype(jnp.float32), axes=(1, 2), norm='ortho')
    H_f, W_f = xf.shape[1], xf.shape[2]
    xb = xf.reshape(B, H_f, W_f, num_blocks, bs)
    xr, xi = jnp.real(xb), jnp.imag(xb)

    w1, b1, w2, b2 = params['w1'], params['b1'], params['w2'], params['b2']
    gelu = lambda v: jax.nn.gelu(v, approximate=False)
    ein = lambda a, w: jnp.einsum('...bi,bio->...bo', a, w,
                                  precision=jax.lax.Precision.HIGHEST)

    o1r = gelu(ein(xr, w1[0]) - ein(xi, w1[1]) + b1[0])
    o1i = gelu(ein(xi, w1[0]) + ein(xr, w1[1]) + b1[1])
    o2r = ein(o1r, w2[0]) - ein(o1i, w2[1]) + b2[0]
    o2i = ein(o1i, w2[0]) + ein(o1r, w2[1]) + b2[1]

    total_modes = H * W // 2 + 1
    kept = int(total_modes * hard_thresholding_fraction)
    wmask = (jnp.arange(W_f) < kept)[None, None, :, None, None]
    o2r = jnp.where(wmask, o2r, 0.0)
    o2i = jnp.where(wmask, o2i, 0.0)

    lam = sparsity_threshold
    o2r = _softshrink(o2r, lam)
    o2i = _softshrink(o2i, lam)
    xc = (o2r + 1j * o2i).reshape(B, H_f, W_f, C)
    return jnp.fft.irfft2(xc, s=(H, W), axes=(1, 2), norm='ortho').astype(x.dtype)


# ----------------------------- main ------------------------------------------

if __name__ == "__main__":
    B, H, W, C = 2, 16, 16, 32
    num_blocks = 8
    hidden_size_factor = 1
    sparsity_threshold = 0.01
    bs = C // num_blocks
    bsf = bs * hidden_size_factor

    key = jax.random.PRNGKey(0)
    k_scale, k_w1, k_b1, k_w2, k_b2, k_x = jax.random.split(key, 6)

    scale = jax.random.normal(k_scale, (1,), dtype=jnp.float32)
    params = {
        'w1': scale * jax.random.normal(k_w1, (2, num_blocks, bs, bsf), dtype=jnp.float32),
        'b1': scale * jax.random.normal(k_b1, (2, num_blocks, bsf), dtype=jnp.float32),
        'w2': scale * jax.random.normal(k_w2, (2, num_blocks, bsf, bs), dtype=jnp.float32),
        'b2': scale * jax.random.normal(k_b2, (2, num_blocks, bs), dtype=jnp.float32),
    }
    x = jax.random.normal(k_x, (B, H, W, C), dtype=jnp.float32)

    common = dict(num_blocks=num_blocks, sparsity_threshold=sparsity_threshold,
                  hidden_size_factor=hidden_size_factor)

    ref = jax.block_until_ready(afno2d_reference(x, params,
                                                 hard_thresholding_fraction=1, **common))

    # 1) f32 path, default hard_thresholding_fraction == 1 (mask elided).
    out = jax.block_until_ready(afno2d_forward(x, params,
                                               hard_thresholding_fraction=1, **common))
    assert out.shape == (B, H, W, C), out.shape
    err = float(jnp.max(jnp.abs(out - ref)))
    assert err < 1e-3, f"f32 max abs error vs reference: {err}"

    # 2) hard_thresholding_fraction < 1 exercises the in-kernel (1, tn) mask.
    frac = 0.05
    out_m = jax.block_until_ready(afno2d_forward(x, params,
                                                 hard_thresholding_fraction=frac, **common))
    ref_m = jax.block_until_ready(afno2d_reference(x, params,
                                                   hard_thresholding_fraction=frac, **common))
    err_m = float(jnp.max(jnp.abs(out_m - ref_m)))
    assert err_m < 1e-3, f"masked max abs error vs reference: {err_m}"

    # 3) bf16 compute + bf16 spectral writeback — loose tolerance.
    out_bf = jax.block_until_ready(afno2d_forward(x, params,
                                                  hard_thresholding_fraction=1,
                                                  compute_dtype=jnp.bfloat16, **common))
    rel = float(jnp.max(jnp.abs(out_bf - ref)) / (jnp.max(jnp.abs(ref)) + 1e-6))
    assert bool(jnp.all(jnp.isfinite(out_bf))) and rel < 0.1, f"bf16 rel error: {rel}"

    # 4) approximate (tanh) GELU path — EUP-friendly, modest tolerance vs exact.
    out_ag = jax.block_until_ready(afno2d_forward(x, params,
                                                  hard_thresholding_fraction=1,
                                                  approx_gelu=True, **common))
    rel_ag = float(jnp.max(jnp.abs(out_ag - ref)) / (jnp.max(jnp.abs(ref)) + 1e-6))
    assert bool(jnp.all(jnp.isfinite(out_ag))) and rel_ag < 0.05, f"approx-GELU rel error: {rel_ag}"

    print("KERNEL_OK")
</pallas_src>

<mosaic_0001>
module attributes {stable_mosaic.version = 11 : i64} {
  func.func @afno_block_mlp_kernel(%arg0: i32, %arg1: i32, %arg2: memref<1x32x384xf32, #tpu.memory_space<vmem>>, %arg3: memref<1x32x384xf32, #tpu.memory_space<vmem>>, %arg4: memref<1x64x64xf32, #tpu.memory_space<vmem>>, %arg5: memref<1x64x1xf32, #tpu.memory_space<vmem>>, %arg6: memref<1x64x64xf32, #tpu.memory_space<vmem>>, %arg7: memref<1x64x1xf32, #tpu.memory_space<vmem>>, %arg8: memref<1x32x384xf32, #tpu.memory_space<vmem>>, %arg9: memref<1x32x384xf32, #tpu.memory_space<vmem>>) attributes {dimension_semantics = [#tpu.dimension_semantics<parallel>, #tpu.dimension_semantics<parallel>], iteration_bounds = array<i64: 1, 1>, scalar_prefetch = 0 : i64, scratch_operands = 0 : i64, tpu.core_type = #tpu.core_type<tc>, window_params = [{transform_indices = @transform_0, window_bounds = array<i64: 1, 32, 384>}, {transform_indices = @transform_1, window_bounds = array<i64: 1, 32, 384>}, {transform_indices = @transform_2, window_bounds = array<i64: 1, 64, 64>}, {transform_indices = @transform_3, window_bounds = array<i64: 1, 64, 1>}, {transform_indices = @transform_4, window_bounds = array<i64: 1, 64, 64>}, {transform_indices = @transform_5, window_bounds = array<i64: 1, 64, 1>}, {transform_indices = @transform_6, window_bounds = array<i64: 1, 32, 384>}, {transform_indices = @transform_7, window_bounds = array<i64: 1, 32, 384>}]} {
    %c0 = arith.constant 0 : index
    %c0_0 = arith.constant 0 : index
    %c0_1 = arith.constant 0 : index
    %0 = vector.load %arg2[%c0, %c0_0, %c0_1] : memref<1x32x384xf32, #tpu.memory_space<vmem>>, vector<1x32x384xf32>
    %1 = vector.shape_cast %0 : vector<1x32x384xf32> to vector<32x384xf32>
    %c0_2 = arith.constant 0 : index
    %c0_3 = arith.constant 0 : index
    %c0_4 = arith.constant 0 : index
    %2 = vector.load %arg3[%c0_2, %c0_3, %c0_4] : memref<1x32x384xf32, #tpu.memory_space<vmem>>, vector<1x32x384xf32>
    %3 = vector.shape_cast %2 : vector<1x32x384xf32> to vector<32x384xf32>
    %4 = tpu.concatenate %1, %3 in 0 : vector<32x384xf32>, vector<32x384xf32> -> vector<64x384xf32>
    %c0_5 = arith.constant 0 : index
    %c0_6 = arith.constant 0 : index
    %c0_7 = arith.constant 0 : index
    %5 = vector.load %arg4[%c0_5, %c0_6, %c0_7] : memref<1x64x64xf32, #tpu.memory_space<vmem>>, vector<1x64x64xf32>
    %6 = vector.shape_cast %5 : vector<1x64x64xf32> to vector<64x64xf32>
    %cst = arith.constant dense<0.000000e+00> : vector<64x384xf32>
    %7 = tpu.matmul %6, %4, %cst {dimension_numbers = #tpu.dot_dimension_numbers<[1], [0], [0], [1], [0, 0, 1, 1], [], []>} : vector<64x64xf32>, vector<64x384xf32>, vector<64x384xf32> -> vector<64x384xf32>
    %c0_8 = arith.constant 0 : index
    %c0_9 = arith.constant 0 : index
    %c0_10 = arith.constant 0 : index
    %8 = vector.load %arg5[%c0_8, %c0_9, %c0_10] : memref<1x64x1xf32, #tpu.memory_space<vmem>>, vector<1x64x1xf32>
    %9 = vector.shape_cast %8 : vector<1x64x1xf32> to vector<64x1xf32>
    %10 = vector.broadcast %9 : vector<64x1xf32> to vector<64x384xf32>
    %11 = arith.addf %7, %10 : vector<64x384xf32>
    %cst_11 = arith.constant 5.000000e-01 : f32
    %12 = vector.broadcast %cst_11 : f32 to vector<64x384xf32>
    %13 = arith.mulf %12, %11 : vector<64x384xf32>
    %cst_12 = arith.constant 0.707106769 : f32
    %14 = vector.broadcast %cst_12 : f32 to vector<64x384xf32>
    %15 = arith.mulf %11, %14 : vector<64x384xf32>
    %16 = math.erf %15 : vector<64x384xf32>
    %cst_13 = arith.constant 1.000000e+00 : f32
    %17 = vector.broadcast %cst_13 : f32 to vector<64x384xf32>
    %18 = arith.addf %17, %16 : vector<64x384xf32>
    %19 = arith.mulf %13, %18 : vector<64x384xf32>
    %c0_14 = arith.constant 0 : index
    %c0_15 = arith.constant 0 : index
    %c0_16 = arith.constant 0 : index
    %20 = vector.load %arg6[%c0_14, %c0_15, %c0_16] : memref<1x64x64xf32, #tpu.memory_space<vmem>>, vector<1x64x64xf32>
    %21 = vector.shape_cast %20 : vector<1x64x64xf32> to vector<64x64xf32>
    %cst_17 = arith.constant dense<0.000000e+00> : vector<64x384xf32>
    %22 = tpu.matmul %21, %19, %cst_17 {dimension_numbers = #tpu.dot_dimension_numbers<[1], [0], [0], [1], [0, 0, 1, 1], [], []>} : vector<64x64xf32>, vector<64x384xf32>, vector<64x384xf32> -> vector<64x384xf32>
    %c0_18 = arith.constant 0 : index
    %c0_19 = arith.constant 0 : index
    %c0_20 = arith.constant 0 : index
    %23 = vector.load %arg7[%c0_18, %c0_19, %c0_20] : memref<1x64x1xf32, #tpu.memory_space<vmem>>, vector<1x64x1xf32>
    %24 = vector.shape_cast %23 : vector<1x64x1xf32> to vector<64x1xf32>
    %25 = vector.broadcast %24 : vector<64x1xf32> to vector<64x384xf32>
    %26 = arith.addf %22, %25 : vector<64x384xf32>
    %cst_21 = arith.constant 0.00999999977 : f32
    %27 = vector.broadcast %cst_21 : f32 to vector<64x384xf32>
    %28 = arith.cmpf ogt, %26, %27 : vector<64x384xf32>
    %cst_22 = arith.constant 0.00999999977 : f32
    %29 = vector.broadcast %cst_22 : f32 to vector<64x384xf32>
    %30 = arith.subf %26, %29 : vector<64x384xf32>
    %cst_23 = arith.constant -0.00999999977 : f32
    %31 = vector.broadcast %cst_23 : f32 to vector<64x384xf32>
    %32 = arith.cmpf olt, %26, %31 : vector<64x384xf32>
    %cst_24 = arith.constant 0.00999999977 : f32
    %33 = vector.broadcast %cst_24 : f32 to vector<64x384xf32>
    %34 = arith.addf %26, %33 : vector<64x384xf32>
    %cst_25 = arith.constant 0.000000e+00 : f32
    %35 = vector.broadcast %cst_25 : f32 to vector<64x384xf32>
    %36 = arith.select %32, %34, %35 : vector<64x384xi1>, vector<64x384xf32>
    %37 = arith.select %28, %30, %36 : vector<64x384xi1>, vector<64x384xf32>
    %38 = vector.extract_strided_slice %37 {offsets = [0, 0], sizes = [32, 384], strides = [1, 1]} : vector<64x384xf32> to vector<32x384xf32>
    %c0_26 = arith.constant 0 : index
    %c0_27 = arith.constant 0 : index
    %c0_28 = arith.constant 0 : index
    %39 = vector.load %arg8[%c0_26, %c0_27, %c0_28] : memref<1x32x384xf32, #tpu.memory_space<vmem>>, vector<1x32x384xf32>
    %40 = vector.shape_cast %39 : vector<1x32x384xf32> to vector<32x384xf32>
    %41 = vector.shape_cast %38 : vector<32x384xf32> to vector<1x32x384xf32>
    tpu.vector_store %arg8[%c0_26, %c0_27, %c0_28], %41 {strides = array<i32>} : memref<1x32x384xf32, #tpu.memory_space<vmem>>, vector<1x32x384xf32>,
    %42 = vector.extract_strided_slice %37 {offsets = [32, 0], sizes = [32, 384], strides = [1, 1]} : vector<64x384xf32> to vector<32x384xf32>
    %c0_29 = arith.constant 0 : index
    %c0_30 = arith.constant 0 : index
    %c0_31 = arith.constant 0 : index
    %43 = vector.load %arg9[%c0_29, %c0_30, %c0_31] : memref<1x32x384xf32, #tpu.memory_space<vmem>>, vector<1x32x384xf32>
    %44 = vector.shape_cast %43 : vector<1x32x384xf32> to vector<32x384xf32>
    %45 = vector.shape_cast %42 : vector<32x384xf32> to vector<1x32x384xf32>
    tpu.vector_store %arg9[%c0_29, %c0_30, %c0_31], %45 {strides = array<i32>} : memref<1x32x384xf32, #tpu.memory_space<vmem>>, vector<1x32x384xf32>,
    return
  }
  func.func @transform_0(%arg0: i32, %arg1: i32) -> (i32, i32, i32) {
    %c0_i32 = arith.constant 0 : i32
    %c0_i32_0 = arith.constant 0 : i32
    return %arg1, %c0_i32, %arg0 : i32, i32, i32
  }
  func.func @transform_1(%arg0: i32, %arg1: i32) -> (i32, i32, i32) {
    %c0_i32 = arith.constant 0 : i32
    %c0_i32_0 = arith.constant 0 : i32
    return %arg1, %c0_i32, %arg0 : i32, i32, i32
  }
  func.func @transform_2(%arg0: i32, %arg1: i32) -> (i32, i32, i32) {
    %c0_i32 = arith.constant 0 : i32
    %c0_i32_0 = arith.constant 0 : i32
    %c0_i32_1 = arith.constant 0 : i32
    return %arg1, %c0_i32, %c0_i32_0 : i32, i32, i32
  }
  func.func @transform_3(%arg0: i32, %arg1: i32) -> (i32, i32, i32) {
    %c0_i32 = arith.constant 0 : i32
    %c0_i32_0 = arith.constant 0 : i32
    %c0_i32_1 = arith.constant 0 : i32
    return %arg1, %c0_i32, %c0_i32_0 : i32, i32, i32
  }
  func.func @transform_4(%arg0: i32, %arg1: i32) -> (i32, i32, i32) {
    %c0_i32 = arith.constant 0 : i32
    %c0_i32_0 = arith.constant 0 : i32
    %c0_i32_1 = arith.constant 0 : i32
    return %arg1, %c0_i32, %c0_i32_0 : i32, i32, i32
  }
  func.func @transform_5(%arg0: i32, %arg1: i32) -> (i32, i32, i32) {
    %c0_i32 = arith.constant 0 : i32
    %c0_i32_0 = arith.constant 0 : i32
    %c0_i32_1 = arith.constant 0 : i32
    return %arg1, %c0_i32, %c0_i32_0 : i32, i32, i32
  }
  func.func @transform_6(%arg0: i32, %arg1: i32) -> (i32, i32, i32) {
    %c0_i32 = arith.constant 0 : i32
    %c0_i32_0 = arith.constant 0 : i32
    return %arg1, %c0_i32, %arg0 : i32, i32, i32
  }
  func.func @transform_7(%arg0: i32, %arg1: i32) -> (i32, i32, i32) {
    %c0_i32 = arith.constant 0 : i32
    %c0_i32_0 = arith.constant 0 : i32
    return %arg1, %c0_i32, %arg0 : i32, i32, i32
  }
}

</mosaic_0001>

<llo_original>
// kernel: tpu_custom_call.1
$region0: #{tpu_custom_call.1}
  #allocation0 [shape = 'u32[]', space=smem, size = 0x4, offset = 0x4, fixed_abs, tag = 'smem constant byte address 0x4 - core index']
  #allocation1 [shape = 'u32[144,128]{1,0:T(1,128)}', space=vmem, size = 0x12000, scoped, tag = 'internal scratch']
  %s0 = inlined_call_operand.vmem [shape: f32[1,32,384], index: 0, kind: input, shape index: {}]
  %s1 = inlined_call_operand.hbm [shape: f32[1,32,384], index: 1, kind: input, shape index: {}]
  %s2 = inlined_call_operand.hbm [shape: f32[1,64,64], index: 2, kind: input, shape index: {}]
  %s3 = inlined_call_operand.vmem [shape: f32[1,64,1], index: 3, kind: input, shape index: {}]
  %s4 = inlined_call_operand.hbm [shape: f32[1,64,64], index: 4, kind: input, shape index: {}]
  %s5 = inlined_call_operand.vmem [shape: f32[1,64,1], index: 5, kind: input, shape index: {}]
  %s6 = inlined_call_operand.hbm [shape: f32[1,32,384], index: 6, kind: output, shape index: {0}]
  %s7 = inlined_call_operand.hbm [shape: f32[1,32,384], index: 7, kind: output, shape index: {1}]
  %8 = xla_tuple %s6, %s7
  %s9 = sld [smem:[#allocation0]]
  $region54: #{tpu_custom_call.1} parent=0
    _
  %s11 = ssub.s32 1, %s9
  %s12 = scalar_select 0, %s11, %s9
  $region1: #{tpu_custom_call.1} parent=0
    #allocation2 [shape = 'u8[49152]{0}', space=vmem, size = 0xc000, scoped, tag = 'input window, operand 1, single buffered']
    #allocation3 [shape = 's32[1]{0}', space=sflag, size = 0x4, scoped, tag = 'scoped memory for tpu_custom_call.1']
    #allocation4 [shape = 's32[1]{0}', space=sflag, size = 0x4, scoped, tag = 'scoped memory for tpu_custom_call.1']
    #allocation5 [shape = 'u8[32768]{0}', space=vmem, size = 0x8000, scoped, tag = 'input window, operand 2, single buffered']
    #allocation6 [shape = 's32[1]{0}', space=sflag, size = 0x4, scoped, tag = 'scoped memory for tpu_custom_call.1']
    #allocation7 [shape = 'u8[32768]{0}', space=vmem, size = 0x8000, scoped, tag = 'input window, operand 4, single buffered']
    #allocation8 [shape = 'u8[49152]{0}', space=vmem, size = 0xc000, scoped, tag = 'output window, operand 0, single buffered']
    #allocation9 [shape = 'u8[49152]{0}', space=vmem, size = 0xc000, scoped, tag = 'output window, operand 1, single buffered']
    #allocation10 [shape = 's32[1]{0}', space=sflag, size = 0x4, scoped, tag = 'scoped memory for tpu_custom_call.1']
    %13 = vsyncpa [#allocation3], 0
    %14 = vsyncpa [#allocation6], 0
    %15 = vsyncpa [#allocation4], 0
    %16 = vsyncpa [#allocation10], 0
    // Predicated region
    $region2: #{tpu_custom_call.1} parent=1 // pred_check
      _
    $region3: #{tpu_custom_call.1} parent=1 // pred_check_branch
      %18 = sbr.rel (0) target = $region5
    $region4: #{tpu_custom_call.1} parent=1 // pred_region
      _
    $region5: #{tpu_custom_call.1} parent=1 // pred_fallthru
      _
    // Predicated region
    $region6: #{tpu_custom_call.1} parent=1 // pred_check
      _
    $region7: #{tpu_custom_call.1} parent=1 // pred_check_branch
      %20 = sbr.rel (0) target = $region9
    $region8: #{tpu_custom_call.1} parent=1 // pred_region
      %s22 = ssub.s32 1536, 1536
      %23 = vsyncadd [#allocation3], %s22
      %s24 = sshll.u32 [#allocation2], 4
      %s25 = int_to_ptr.vmem [resolvable:$true] %s24
      %30 = dma.hbm_to_vmem [thread:$0]  %s1, 1536, %s25, [#allocation3], 384, 384, 24
    $region9: #{tpu_custom_call.1} parent=1 // pred_fallthru
      _
    // Predicated region
    $region10: #{tpu_custom_call.1} parent=1 // pred_check
      _
    $region11: #{tpu_custom_call.1} parent=1 // pred_check_branch
      %32 = sbr.rel (0) target = $region13
    $region12: #{tpu_custom_call.1} parent=1 // pred_region
      %s34 = ssub.s32 1024, 1024
      %35 = vsyncadd [#allocation6], %s34
      %s36 = sshll.u32 [#allocation5], 4
      %s37 = int_to_ptr.vmem [resolvable:$true] %s36
      %42 = dma.hbm_to_vmem [thread:$0]  %s2, 1024, %s37, [#allocation6], 128, 128, 8
    $region13: #{tpu_custom_call.1} parent=1 // pred_fallthru
      _
    // Predicated region
    $region14: #{tpu_custom_call.1} parent=1 // pred_check
      _
    $region15: #{tpu_custom_call.1} parent=1 // pred_check_branch
      %44 = sbr.rel (0) target = $region17
    $region16: #{tpu_custom_call.1} parent=1 // pred_region
      _
    $region17: #{tpu_custom_call.1} parent=1 // pred_fallthru
      _
    // Predicated region
    $region18: #{tpu_custom_call.1} parent=1 // pred_check
      _
    $region19: #{tpu_custom_call.1} parent=1 // pred_check_branch
      %46 = sbr.rel (0) target = $region21
    $region20: #{tpu_custom_call.1} parent=1 // pred_region
      %s48 = ssub.s32 1024, 1024
      %49 = vsyncadd [#allocation6], %s48
      %s50 = sshll.u32 [#allocation7], 4
      %s51 = int_to_ptr.vmem [resolvable:$true] %s50
      %56 = dma.hbm_to_vmem [thread:$0]  %s4, 1024, %s51, [#allocation6], 128, 128, 8
    $region21: #{tpu_custom_call.1} parent=1 // pred_fallthru
      _
    // Predicated region
    $region22: #{tpu_custom_call.1} parent=1 // pred_check
      _
    $region23: #{tpu_custom_call.1} parent=1 // pred_check_branch
      %58 = sbr.rel (0) target = $region25
    $region24: #{tpu_custom_call.1} parent=1 // pred_region
      _
    $region25: #{tpu_custom_call.1} parent=1 // pred_fallthru
      _
    // Predicated region
    $region26: #{tpu_custom_call.1} parent=1 // pred_check
      _
    $region27: #{tpu_custom_call.1} parent=1 // pred_check_branch
      %60 = sbr.rel (0) target = $region29
    $region28: #{tpu_custom_call.1} parent=1 // pred_region
      %61 = dma.done [#allocation3], 1536
    $region29: #{tpu_custom_call.1} parent=1 // pred_fallthru
      _
    // Predicated region
    $region30: #{tpu_custom_call.1} parent=1 // pred_check
      _
    $region31: #{tpu_custom_call.1} parent=1 // pred_check_branch
      %63 = sbr.rel (0) target = $region33
    $region32: #{tpu_custom_call.1} parent=1 // pred_region
      %64 = dma.done [#allocation6], 1024
    $region33: #{tpu_custom_call.1} parent=1 // pred_fallthru
      _
    // Predicated region
    $region34: #{tpu_custom_call.1} parent=1 // pred_check
      _
    $region35: #{tpu_custom_call.1} parent=1 // pred_check_branch
      %66 = sbr.rel (0) target = $region37
    $region36: #{tpu_custom_call.1} parent=1 // pred_region
      %67 = dma.done [#allocation6], 1024
    $region37: #{tpu_custom_call.1} parent=1 // pred_fallthru
      _
    %v68 = vld [vmem:[%s0] sm:$0xff]
    %v69 = vld [vmem:[%s0 + $0x8] sm:$0xff]
    %v70 = vld [vmem:[%s0 + $0x10] sm:$0xff]
    %v71 = vld [vmem:[%s0 + $0x18] sm:$0xff]
    %v72 = vld [vmem:[%s0 + $0x20] sm:$0xff]
    %v73 = vld [vmem:[%s0 + $0x28] sm:$0xff]
    %v74 = vld [vmem:[%s0 + $0x30] sm:$0xff]
    %v75 = vld [vmem:[%s0 + $0x38] sm:$0xff]
    %v76 = vld [vmem:[%s0 + $0x40] sm:$0xff]
    %v77 = vld [vmem:[%s0 + $0x48] sm:$0xff]
    %v78 = vld [vmem:[%s0 + $0x50] sm:$0xff]
    %v79 = vld [vmem:[%s0 + $0x58] sm:$0xff]
    %v80 = vld [vmem:[#allocation2] sm:$0xff]
    %v81 = vld [vmem:[#allocation2 + $0x8] sm:$0xff]
    %v82 = vld [vmem:[#allocation2 + $0x10] sm:$0xff]
    %v83 = vld [vmem:[#allocation2 + $0x18] sm:$0xff]
    %v84 = vld [vmem:[#allocation2 + $0x20] sm:$0xff]
    %v85 = vld [vmem:[#allocation2 + $0x28] sm:$0xff]
    %v86 = vld [vmem:[#allocation2 + $0x30] sm:$0xff]
    %v87 = vld [vmem:[#allocation2 + $0x38] sm:$0xff]
    %v88 = vld [vmem:[#allocation2 + $0x40] sm:$0xff]
    %v89 = vld [vmem:[#allocation2 + $0x48] sm:$0xff]
    %v90 = vld [vmem:[#allocation2 + $0x50] sm:$0xff]
    %v91 = vld [vmem:[#allocation2 + $0x58] sm:$0xff]
    %v92 = vld [vmem:[#allocation5] sm:$0xff]
    %v93 = vld [vmem:[#allocation5 + $0x8] sm:$0xff]
    %v94 = vld [vmem:[#allocation5 + $0x10] sm:$0xff]
    %v95 = vld [vmem:[#allocation5 + $0x18] sm:$0xff]
    %v96 = vld [vmem:[#allocation5 + $0x20] sm:$0xff]
    %v97 = vld [vmem:[#allocation5 + $0x28] sm:$0xff]
    %v98 = vld [vmem:[#allocation5 + $0x30] sm:$0xff]
    %v99 = vld [vmem:[#allocation5 + $0x38] sm:$0xff]
    %v100 = vld [vmem:[%s3] sm:$0xff]
    %v101 = vld [vmem:[%s3 + $0x8] sm:$0xff]
    %v102 = vld [vmem:[%s3 + $0x10] sm:$0xff]
    %v103 = vld [vmem:[%s3 + $0x18] sm:$0xff]
    %v104 = vld [vmem:[%s3 + $0x20] sm:$0xff]
    %v105 = vld [vmem:[%s3 + $0x28] sm:$0xff]
    %v106 = vld [vmem:[%s3 + $0x30] sm:$0xff]
    %v107 = vld [vmem:[%s3 + $0x38] sm:$0xff]
    %109 = vset.pattern.permute.xlu0 0
    %110 = vperm.xlu0 %109, %v100
    %v111 = vpop.permute.xlu0 %110
    %114 = vset.pattern.permute.xlu0 0
    %115 = vperm.xlu0 %114, %v101
    %v116 = vpop.permute.xlu0 %115
    %119 = vset.pattern.permute.xlu0 0
    %120 = vperm.xlu0 %119, %v102
    %v121 = vpop.permute.xlu0 %120
    %124 = vset.pattern.permute.xlu0 0
    %125 = vperm.xlu0 %124, %v103
    %v126 = vpop.permute.xlu0 %125
    %129 = vset.pattern.permute.xlu0 0
    %130 = vperm.xlu0 %129, %v104
    %v131 = vpop.permute.xlu0 %130
    %134 = vset.pattern.permute.xlu0 0
    %135 = vperm.xlu0 %134, %v105
    %v136 = vpop.permute.xlu0 %135
    %139 = vset.pattern.permute.xlu0 0
    %140 = vperm.xlu0 %139, %v106
    %v141 = vpop.permute.xlu0 %140
    %144 = vset.pattern.permute.xlu0 0
    %145 = vperm.xlu0 %144, %v107
    %v146 = vpop.permute.xlu0 %145
    %vm148 = vcmask 523264
    %v150 = vsel %vm148, %v92, 0
    %v153 = vsel %vm148, %v93, 0
    %v156 = vsel %vm148, %v94, 0
    %v159 = vsel %vm148, %v95, 0
    %v162 = vsel %vm148, %v96, 0
    %v165 = vsel %vm148, %v97, 0
    %v168 = vsel %vm148, %v98, 0
    %v171 = vsel %vm148, %v99, 0
    %173 = vmatprep.subr.mxu0 0.0
    %174 = vmatpush1.msra.mxu0 0.0
    %175 = vmatprep.subr.mxu0 0.0
    %176 = vmatpush1.msra.mxu0 0.0
    %177 = vmatprep.subr.mxu0 0.0
    %178 = vmatpush1.msra.mxu0 0.0
    %179 = vmatprep.subr.mxu0 0.0
    %180 = vmatpush1.msra.mxu0 0.0
    %181 = vmatprep.subr.mxu0 0.0
    %182 = vmatpush1.msra.mxu0 0.0
    %183 = vmatprep.subr.mxu0 0.0
    %184 = vmatpush1.msra.mxu0 0.0
    %185 = vmatprep.subr.mxu0 0.0
    %186 = vmatpush1.msra.mxu0 0.0
    %187 = vmatprep.subr.mxu0 0.0
    %188 = vmatpush1.msra.mxu0 0.0
    %189 = vmatprep.subr.mxu0 %v90
    %190 = vmatpush1.msra.mxu0 %v89
    %191 = vmatprep.subr.mxu0 %v87
    %192 = vmatpush1.msra.mxu0 %v86
    %193 = vmatprep.subr.mxu0 %v84
    %194 = vmatpush1.msra.mxu0 %v83
    %195 = vmatprep.subr.mxu0 %v81
    %196 = vmatpush1.msra.mxu0 %v80
    %197 = vmatprep.subr.mxu0 %v78
    %198 = vmatpush1.msra.mxu0 %v77
    %199 = vmatprep.subr.mxu0 %v75
    %200 = vmatpush1.msra.mxu0 %v74
    %201 = vmatprep.subr.mxu0 %v72
    %202 = vmatpush1.msra.mxu0 %v71
    %203 = vmatprep.subr.mxu0 %v69
    %204 = vmatpush1.msra.mxu0 %v68
    %205 = vmatprep.subr.mxu0 0.0
    %206 = vmatpush2.msra.mxu0 0.0
    %207 = vmatprep.subr.mxu0 0.0
    %208 = vmatpush2.msra.mxu0 0.0
    %209 = vmatprep.subr.mxu0 0.0
    %210 = vmatpush2.msra.mxu0 0.0
    %211 = vmatprep.subr.mxu0 0.0
    %212 = vmatpush2.msra.mxu0 0.0
    %213 = vmatprep.subr.mxu0 0.0
    %214 = vmatpush2.msra.mxu0 0.0
    %215 = vmatprep.subr.mxu0 0.0
    %216 = vmatpush2.msra.mxu0 0.0
    %217 = vmatprep.subr.mxu0 0.0
    %218 = vmatpush2.msra.mxu0 0.0
    %219 = vmatprep.subr.mxu0 0.0
    %220 = vmatpush2.msra.mxu0 0.0
    %221 = vmatprep.subr.mxu0 0.0
    %222 = vmatpush2.msra.mxu0 0.0
    %223 = vmatprep.subr.mxu0 0.0
    %224 = vmatpush2.msra.mxu0 0.0
    %225 = vmatprep.subr.mxu0 0.0
    %226 = vmatpush2.msra.mxu0 0.0
    %227 = vmatprep.subr.mxu0 0.0
    %228 = vmatpush2.msra.mxu0 0.0
    %229 = vmatprep.subr.mxu0 0.0
    %230 = vmatpush2.msra.mxu0 0.0
    %231 = vmatprep.subr.mxu0 0.0
    %232 = vmatpush2.msra.mxu0 0.0
    %233 = vmatprep.subr.mxu0 0.0
    %234 = vmatpush2.msra.mxu0 0.0
    %235 = vmatprep.subr.mxu0 0.0
    %236 = vmatpush2.msra.mxu0 0.0
    %237 = vmatprep.mubr.f32.mxu0 0.0
    %238 = vmatmul.mubr.f32.gmra.mxu0 %v150
    %v239 = vpop.f32.mrf.mxu0
    %v240 = vadd.f32 %v111, %v239
    %v241 = vpop.f32.mrf.mxu0
    %v242 = vadd.f32 %v111, %v241
    %243 = vmatprep.mubr.f32.mxu0 0.0
    %244 = vmatmul.mubr.f32.gmra.mxu0 %v153
    %v245 = vpop.f32.mrf.mxu0
    %v246 = vadd.f32 %v116, %v245
    %v247 = vpop.f32.mrf.mxu0
    %v248 = vadd.f32 %v116, %v247
    %249 = vmatprep.mubr.f32.mxu0 0.0
    %250 = vmatmul.mubr.f32.gmra.mxu0 %v156
    %v251 = vpop.f32.mrf.mxu0
    %v252 = vadd.f32 %v121, %v251
    %v253 = vpop.f32.mrf.mxu0
    %v254 = vadd.f32 %v121, %v253
    %255 = vmatprep.mubr.f32.mxu0 0.0
    %256 = vmatmul.mubr.f32.gmra.mxu0 %v159
    %v257 = vpop.f32.mrf.mxu0
    %v258 = vadd.f32 %v126, %v257
    %v259 = vpop.f32.mrf.mxu0
    %v260 = vadd.f32 %v126, %v259
    %261 = vmatprep.mubr.f32.mxu0 0.0
    %262 = vmatmul.mubr.f32.gmra.mxu0 %v162
    %v263 = vpop.f32.mrf.mxu0
    %v264 = vadd.f32 %v131, %v263
    %v265 = vpop.f32.mrf.mxu0
    %v266 = vadd.f32 %v131, %v265
    %267 = vmatprep.mubr.f32.mxu0 0.0
    %268 = vmatmul.mubr.f32.gmra.mxu0 %v165
    %v269 = vpop.f32.mrf.mxu0
    %v270 = vadd.f32 %v136, %v269
    %v271 = vpop.f32.mrf.mxu0
    %v272 = vadd.f32 %v136, %v271
    %273 = vmatprep.mubr.f32.mxu0 0.0
    %274 = vmatmul.mubr.f32.gmra.mxu0 %v168
    %v275 = vpop.f32.mrf.mxu0
    %v276 = vadd.f32 %v141, %v275
    %v277 = vpop.f32.mrf.mxu0
    %v278 = vadd.f32 %v141, %v277
    %279 = vmatprep.mubr.f32.mxu0 0.0
    %280 = vmatmul.mubr.f32.gmra.mxu0 %v171
    %v281 = vpop.f32.mrf.mxu0
    %v282 = vadd.f32 %v146, %v281
    %v283 = vpop.f32.mrf.mxu0
    %v284 = vadd.f32 %v146, %v283
    %285 = vdwg.mxu0
    %286 = vmatprep.subr.mxu0 0.0
    %287 = vmatpush1.msra.mxu0 0.0
    %288 = vmatprep.subr.mxu0 0.0
    %289 = vmatpush1.msra.mxu0 0.0
    %290 = vmatprep.subr.mxu0 0.0
    %291 = vmatpush1.msra.mxu0 0.0
    %292 = vmatprep.subr.mxu0 0.0
    %293 = vmatpush1.msra.mxu0 0.0
    %294 = vmatprep.subr.mxu0 0.0
    %295 = vmatpush1.msra.mxu0 0.0
    %296 = vmatprep.subr.mxu0 0.0
    %297 = vmatpush1.msra.mxu0 0.0
    %298 = vmatprep.subr.mxu0 0.0
    %299 = vmatpush1.msra.mxu0 0.0
    %300 = vmatprep.subr.mxu0 0.0
    %301 = vmatpush1.msra.mxu0 0.0
    %302 = vmatprep.subr.mxu0 0.0
    %303 = vmatpush1.msra.mxu0 %v91
    %304 = vmatprep.subr.mxu0 0.0
    %305 = vmatpush1.msra.mxu0 %v88
    %306 = vmatprep.subr.mxu0 0.0
    %307 = vmatpush1.msra.mxu0 %v85
    %308 = vmatprep.subr.mxu0 0.0
    %309 = vmatpush1.msra.mxu0 %v82
    %310 = vmatprep.subr.mxu0 0.0
    %311 = vmatpush1.msra.mxu0 %v79
    %312 = vmatprep.subr.mxu0 0.0
    %313 = vmatpush1.msra.mxu0 %v76
    %314 = vmatprep.subr.mxu0 0.0
    %315 = vmatpush1.msra.mxu0 %v73
    %316 = vmatprep.subr.mxu0 0.0
    %317 = vmatpush1.msra.mxu0 %v70
    %318 = vmatprep.subr.mxu0 0.0
    %319 = vmatpush2.msra.mxu0 0.0
    %320 = vmatprep.subr.mxu0 0.0
    %321 = vmatpush2.msra.mxu0 0.0
    %322 = vmatprep.subr.mxu0 0.0
    %323 = vmatpush2.msra.mxu0 0.0
    %324 = vmatprep.subr.mxu0 0.0
    %325 = vmatpush2.msra.mxu0 0.0
    %326 = vmatprep.subr.mxu0 0.0
    %327 = vmatpush2.msra.mxu0 0.0
    %328 = vmatprep.subr.mxu0 0.0
    %329 = vmatpush2.msra.mxu0 0.0
    %330 = vmatprep.subr.mxu0 0.0
    %331 = vmatpush2.msra.mxu0 0.0
    %332 = vmatprep.subr.mxu0 0.0
    %333 = vmatpush2.msra.mxu0 0.0
    %334 = vmatprep.subr.mxu0 0.0
    %335 = vmatpush2.msra.mxu0 0.0
    %336 = vmatprep.subr.mxu0 0.0
    %337 = vmatpush2.msra.mxu0 0.0
    %338 = vmatprep.subr.mxu0 0.0
    %339 = vmatpush2.msra.mxu0 0.0
    %340 = vmatprep.subr.mxu0 0.0
    %341 = vmatpush2.msra.mxu0 0.0
    %342 = vmatprep.subr.mxu0 0.0
    %343 = vmatpush2.msra.mxu0 0.0
    %344 = vmatprep.subr.mxu0 0.0
    %345 = vmatpush2.msra.mxu0 0.0
    %346 = vmatprep.subr.mxu0 0.0
    %347 = vmatpush2.msra.mxu0 0.0
    %348 = vmatprep.subr.mxu0 0.0
    %349 = vmatpush2.msra.mxu0 0.0
    %350 = vmatprep.mubr.f32.mxu0 0.0
    %351 = vmatmul.mubr.f32.gmra.mxu0 %v150
    %v352 = vpop.f32.mrf.mxu0
    %v353 = vadd.f32 %v111, %v352
    %v354 = vpop.f32.mrf.mxu0
    %355 = vmatprep.mubr.f32.mxu0 0.0
    %356 = vmatmul.mubr.f32.gmra.mxu0 %v153
    %v357 = vpop.f32.mrf.mxu0
    %v358 = vadd.f32 %v116, %v357
    %v359 = vpop.f32.mrf.mxu0
    %360 = vmatprep.mubr.f32.mxu0 0.0
    %361 = vmatmul.mubr.f32.gmra.mxu0 %v156
    %v362 = vpop.f32.mrf.mxu0
    %v363 = vadd.f32 %v121, %v362
    %v364 = vpop.f32.mrf.mxu0
    %365 = vmatprep.mubr.f32.mxu0 0.0
    %366 = vmatmul.mubr.f32.gmra.mxu0 %v159
    %v367 = vpop.f32.mrf.mxu0
    %v368 = vadd.f32 %v126, %v367
    %v369 = vpop.f32.mrf.mxu0
    %370 = vmatprep.mubr.f32.mxu0 0.0
    %371 = vmatmul.mubr.f32.gmra.mxu0 %v162
    %v372 = vpop.f32.mrf.mxu0
    %v373 = vadd.f32 %v131, %v372
    %v374 = vpop.f32.mrf.mxu0
    %375 = vmatprep.mubr.f32.mxu0 0.0
    %376 = vmatmul.mubr.f32.gmra.mxu0 %v165
    %v377 = vpop.f32.mrf.mxu0
    %v378 = vadd.f32 %v136, %v377
    %v379 = vpop.f32.mrf.mxu0
    %380 = vmatprep.mubr.f32.mxu0 0.0
    %381 = vmatmul.mubr.f32.gmra.mxu0 %v168
    %v382 = vpop.f32.mrf.mxu0
    %v383 = vadd.f32 %v141, %v382
    %v384 = vpop.f32.mrf.mxu0
    %385 = vmatprep.mubr.f32.mxu0 0.0
    %386 = vmatmul.mubr.f32.gmra.mxu0 %v171
    %v387 = vpop.f32.mrf.mxu0
    %v388 = vadd.f32 %v146, %v387
    %v389 = vpop.f32.mrf.mxu0
    %390 = vdwg.mxu0
    %v391 = vmul.f32 %v240, 0.5
    %v392 = vmul.f32 %v242, 0.5
    %v393 = vmul.f32 %v353, 0.5
    %v394 = vmul.f32 %v246, 0.5
    %v395 = vmul.f32 %v248, 0.5
    %v396 = vmul.f32 %v358, 0.5
    %v397 = vmul.f32 %v252, 0.5
    %v398 = vmul.f32 %v254, 0.5
    %v399 = vmul.f32 %v363, 0.5
    %v400 = vmul.f32 %v258, 0.5
    %v401 = vmul.f32 %v260, 0.5
    %v402 = vmul.f32 %v368, 0.5
    %v403 = vmul.f32 %v264, 0.5
    %v404 = vmul.f32 %v266, 0.5
    %v405 = vmul.f32 %v373, 0.5
    %v406 = vmul.f32 %v270, 0.5
    %v407 = vmul.f32 %v272, 0.5
    %v408 = vmul.f32 %v378, 0.5
    %v409 = vmul.f32 %v276, 0.5
    %v410 = vmul.f32 %v278, 0.5
    %v411 = vmul.f32 %v383, 0.5
    %v412 = vmul.f32 %v282, 0.5
    %v413 = vmul.f32 %v284, 0.5
    %v414 = vmul.f32 %v388, 0.5
    %v415 = vmul.f32 %v240, 0.70710677
    %v416 = vmul.f32 %v242, 0.70710677
    %v417 = vmul.f32 %v353, 0.70710677
    %v418 = vmul.f32 %v246, 0.70710677
    %v419 = vmul.f32 %v248, 0.70710677
    %v420 = vmul.f32 %v358, 0.70710677
    %v421 = vmul.f32 %v252, 0.70710677
    %v422 = vmul.f32 %v254, 0.70710677
    %v423 = vmul.f32 %v363, 0.70710677
    %v424 = vmul.f32 %v258, 0.70710677
    %v425 = vmul.f32 %v260, 0.70710677
    %v426 = vmul.f32 %v368, 0.70710677
    %v427 = vmul.f32 %v264, 0.70710677
    %v428 = vmul.f32 %v266, 0.70710677
    %v429 = vmul.f32 %v373, 0.70710677
    %v430 = vmul.f32 %v270, 0.70710677
    %v431 = vmul.f32 %v272, 0.70710677
    %v432 = vmul.f32 %v378, 0.70710677
    %v433 = vmul.f32 %v276, 0.70710677
    %v434 = vmul.f32 %v278, 0.70710677
    %v435 = vmul.f32 %v383, 0.70710677
    %v436 = vmul.f32 %v282, 0.70710677
    %v437 = vmul.f32 %v284, 0.70710677
    %v438 = vmul.f32 %v388, 0.70710677
    %v439 = verf.f32.pop %v415
    %v440 = verf.f32.pop %v416
    %v441 = verf.f32.pop %v417
    %v442 = verf.f32.pop %v418
    %v443 = verf.f32.pop %v419
    %v444 = verf.f32.pop %v420
    %v445 = verf.f32.pop %v421
    %v446 = verf.f32.pop %v422
    %v447 = verf.f32.pop %v423
    %v448 = verf.f32.pop %v424
    %v449 = verf.f32.pop %v425
    %v450 = verf.f32.pop %v426
    %v451 = verf.f32.pop %v427
    %v452 = verf.f32.pop %v428
    %v453 = verf.f32.pop %v429
    %v454 = verf.f32.pop %v430
    %v455 = verf.f32.pop %v431
    %v456 = verf.f32.pop %v432
    %v457 = verf.f32.pop %v433
    %v458 = verf.f32.pop %v434
    %v459 = verf.f32.pop %v435
    %v460 = verf.f32.pop %v436
    %v461 = verf.f32.pop %v437
    %v462 = verf.f32.pop %v438
    %v463 = vadd.f32 %v439, 1.0
    %v464 = vadd.f32 %v440, 1.0
    %v465 = vadd.f32 %v441, 1.0
    %v466 = vadd.f32 %v442, 1.0
    %v467 = vadd.f32 %v443, 1.0
    %v468 = vadd.f32 %v444, 1.0
    %v469 = vadd.f32 %v445, 1.0
    %v470 = vadd.f32 %v446, 1.0
    %v471 = vadd.f32 %v447, 1.0
    %v472 = vadd.f32 %v448, 1.0
    %v473 = vadd.f32 %v449, 1.0
    %v474 = vadd.f32 %v450, 1.0
    %v475 = vadd.f32 %v451, 1.0
    %v476 = vadd.f32 %v452, 1.0
    %v477 = vadd.f32 %v453, 1.0
    %v478 = vadd.f32 %v454, 1.0
    %v479 = vadd.f32 %v455, 1.0
    %v480 = vadd.f32 %v456, 1.0
    %v481 = vadd.f32 %v457, 1.0
    %v482 = vadd.f32 %v458, 1.0
    %v483 = vadd.f32 %v459, 1.0
    %v484 = vadd.f32 %v460, 1.0
    %v485 = vadd.f32 %v461, 1.0
    %v486 = vadd.f32 %v462, 1.0
    %v487 = vmul.f32 %v391, %v463
    %v488 = vmul.f32 %v392, %v464
    %v489 = vmul.f32 %v393, %v465
    %v490 = vmul.f32 %v394, %v466
    %v491 = vmul.f32 %v395, %v467
    %v492 = vmul.f32 %v396, %v468
    %v493 = vmul.f32 %v397, %v469
    %v494 = vmul.f32 %v398, %v470
    %v495 = vmul.f32 %v399, %v471
    %v496 = vmul.f32 %v400, %v472
    %v497 = vmul.f32 %v401, %v473
    %v498 = vmul.f32 %v402, %v474
    %v499 = vmul.f32 %v403, %v475
    %v500 = vmul.f32 %v404, %v476
    %v501 = vmul.f32 %v405, %v477
    %v502 = vmul.f32 %v406, %v478
    %v503 = vmul.f32 %v407, %v479
    %v504 = vmul.f32 %v408, %v480
    %v505 = vmul.f32 %v409, %v481
    %v506 = vmul.f32 %v410, %v482
    %v507 = vmul.f32 %v411, %v483
    %v508 = vmul.f32 %v412, %v484
    %v509 = vmul.f32 %v413, %v485
    %v510 = vmul.f32 %v414, %v486
    %v511 = vld [vmem:[#allocation7] sm:$0xff]
    %v512 = vld [vmem:[#allocation7 + $0x8] sm:$0xff]
    %v513 = vld [vmem:[#allocation7 + $0x10] sm:$0xff]
    %v514 = vld [vmem:[#allocation7 + $0x18] sm:$0xff]
    %v515 = vld [vmem:[#allocation7 + $0x20] sm:$0xff]
    %v516 = vld [vmem:[#allocation7 + $0x28] sm:$0xff]
    %v517 = vld [vmem:[#allocation7 + $0x30] sm:$0xff]
    %v518 = vld [vmem:[#allocation7 + $0x38] sm:$0xff]
    %v519 = vld [vmem:[%s5] sm:$0xff]
    %v520 = vld [vmem:[%s5 + $0x8] sm:$0xff]
    %v521 = vld [vmem:[%s5 + $0x10] sm:$0xff]
    %v522 = vld [vmem:[%s5 + $0x18] sm:$0xff]
    %v523 = vld [vmem:[%s5 + $0x20] sm:$0xff]
    %v524 = vld [vmem:[%s5 + $0x28] sm:$0xff]
    %v525 = vld [vmem:[%s5 + $0x30] sm:$0xff]
    %v526 = vld [vmem:[%s5 + $0x38] sm:$0xff]
    %528 = vset.pattern.permute.xlu0 0
    %529 = vperm.xlu0 %528, %v519
    %v530 = vpop.permute.xlu0 %529
    %533 = vset.pattern.permute.xlu0 0
    %534 = vperm.xlu0 %533, %v520
    %v535 = vpop.permute.xlu0 %534
    %538 = vset.pattern.permute.xlu0 0
    %539 = vperm.xlu0 %538, %v521
    %v540 = vpop.permute.xlu0 %539
    %543 = vset.pattern.permute.xlu0 0
    %544 = vperm.xlu0 %543, %v522
    %v545 = vpop.permute.xlu0 %544
    %548 = vset.pattern.permute.xlu0 0
    %549 = vperm.xlu0 %548, %v523
    %v550 = vpop.permute.xlu0 %549
    %553 = vset.pattern.permute.xlu0 0
    %554 = vperm.xlu0 %553, %v524
    %v555 = vpop.permute.xlu0 %554
    %558 = vset.pattern.permute.xlu0 0
    %559 = vperm.xlu0 %558, %v525
    %v560 = vpop.permute.xlu0 %559
    %563 = vset.pattern.permute.xlu0 0
    %564 = vperm.xlu0 %563, %v526
    %v565 = vpop.permute.xlu0 %564
    %v568 = vsel %vm148, %v511, 0
    %v571 = vsel %vm148, %v512, 0
    %v574 = vsel %vm148, %v513, 0
    %v577 = vsel %vm148, %v514, 0
    %v580 = vsel %vm148, %v515, 0
    %v583 = vsel %vm148, %v516, 0
    %v586 = vsel %vm148, %v517, 0
    %v589 = vsel %vm148, %v518, 0
    %591 = vmatprep.subr.mxu0 0.0
    %592 = vmatpush1.msra.mxu0 0.0
    %593 = vmatprep.subr.mxu0 0.0
    %594 = vmatpush1.msra.mxu0 0.0
    %595 = vmatprep.subr.mxu0 0.0
    %596 = vmatpush1.msra.mxu0 0.0
    %597 = vmatprep.subr.mxu0 0.0
    %598 = vmatpush1.msra.mxu0 0.0
    %599 = vmatprep.subr.mxu0 0.0
    %600 = vmatpush1.msra.mxu0 0.0
    %601 = vmatprep.subr.mxu0 0.0
    %602 = vmatpush1.msra.mxu0 0.0
    %603 = vmatprep.subr.mxu0 0.0
    %604 = vmatpush1.msra.mxu0 0.0
    %605 = vmatprep.subr.mxu0 0.0
    %606 = vmatpush1.msra.mxu0 0.0
    %607 = vmatprep.subr.mxu0 %v509
    %608 = vmatpush1.msra.mxu0 %v508
    %609 = vmatprep.subr.mxu0 %v506
    %610 = vmatpush1.msra.mxu0 %v505
    %611 = vmatprep.subr.mxu0 %v503
    %612 = vmatpush1.msra.mxu0 %v502
    %613 = vmatprep.subr.mxu0 %v500
    %614 = vmatpush1.msra.mxu0 %v499
    %615 = vmatprep.subr.mxu0 %v497
    %616 = vmatpush1.msra.mxu0 %v496
    %617 = vmatprep.subr.mxu0 %v494
    %618 = vmatpush1.msra.mxu0 %v493
    %619 = vmatprep.subr.mxu0 %v491
    %620 = vmatpush1.msra.mxu0 %v490
    %621 = vmatprep.subr.mxu0 %v488
    %622 = vmatpush1.msra.mxu0 %v487
    %623 = vmatprep.subr.mxu0 0.0
    %624 = vmatpush2.msra.mxu0 0.0
    %625 = vmatprep.subr.mxu0 0.0
    %626 = vmatpush2.msra.mxu0 0.0
    %627 = vmatprep.subr.mxu0 0.0
    %628 = vmatpush2.msra.mxu0 0.0
    %629 = vmatprep.subr.mxu0 0.0
    %630 = vmatpush2.msra.mxu0 0.0
    %631 = vmatprep.subr.mxu0 0.0
    %632 = vmatpush2.msra.mxu0 0.0
    %633 = vmatprep.subr.mxu0 0.0
    %634 = vmatpush2.msra.mxu0 0.0
    %635 = vmatprep.subr.mxu0 0.0
    %636 = vmatpush2.msra.mxu0 0.0
    %637 = vmatprep.subr.mxu0 0.0
    %638 = vmatpush2.msra.mxu0 0.0
    %639 = vmatprep.subr.mxu0 0.0
    %640 = vmatpush2.msra.mxu0 0.0
    %641 = vmatprep.subr.mxu0 0.0
    %642 = vmatpush2.msra.mxu0 0.0
    %643 = vmatprep.subr.mxu0 0.0
    %644 = vmatpush2.msra.mxu0 0.0
    %645 = vmatprep.subr.mxu0 0.0
    %646 = vmatpush2.msra.mxu0 0.0
    %647 = vmatprep.subr.mxu0 0.0
    %648 = vmatpush2.msra.mxu0 0.0
    %649 = vmatprep.subr.mxu0 0.0
    %650 = vmatpush2.msra.mxu0 0.0
    %651 = vmatprep.subr.mxu0 0.0
    %652 = vmatpush2.msra.mxu0 0.0
    %653 = vmatprep.subr.mxu0 0.0
    %654 = vmatpush2.msra.mxu0 0.0
    %655 = vmatprep.mubr.f32.mxu0 0.0
    %656 = vmatmul.mubr.f32.gmra.mxu0 %v568
    %v657 = vpop.f32.mrf.mxu0
    %v658 = vadd.f32 %v530, %v657
    %v659 = vpop.f32.mrf.mxu0
    %v660 = vadd.f32 %v530, %v659
    %661 = vmatprep.mubr.f32.mxu0 0.0
    %662 = vmatmul.mubr.f32.gmra.mxu0 %v571
    %v663 = vpop.f32.mrf.mxu0
    %v664 = vadd.f32 %v535, %v663
    %v665 = vpop.f32.mrf.mxu0
    %v666 = vadd.f32 %v535, %v665
    %667 = vmatprep.mubr.f32.mxu0 0.0
    %668 = vmatmul.mubr.f32.gmra.mxu0 %v574
    %v669 = vpop.f32.mrf.mxu0
    %v670 = vadd.f32 %v540, %v669
    %v671 = vpop.f32.mrf.mxu0
    %v672 = vadd.f32 %v540, %v671
    %673 = vmatprep.mubr.f32.mxu0 0.0
    %674 = vmatmul.mubr.f32.gmra.mxu0 %v577
    %v675 = vpop.f32.mrf.mxu0
    %v676 = vadd.f32 %v545, %v675
    %v677 = vpop.f32.mrf.mxu0
    %v678 = vadd.f32 %v545, %v677
    %679 = vmatprep.mubr.f32.mxu0 0.0
    %680 = vmatmul.mubr.f32.gmra.mxu0 %v580
    %v681 = vpop.f32.mrf.mxu0
    %v682 = vadd.f32 %v550, %v681
    %v683 = vpop.f32.mrf.mxu0
    %v684 = vadd.f32 %v550, %v683
    %685 = vmatprep.mubr.f32.mxu0 0.0
    %686 = vmatmul.mubr.f32.gmra.mxu0 %v583
    %v687 = vpop.f32.mrf.mxu0
    %v688 = vadd.f32 %v555, %v687
    %v689 = vpop.f32.mrf.mxu0
    %v690 = vadd.f32 %v555, %v689
    %691 = vmatprep.mubr.f32.mxu0 0.0
    %692 = vmatmul.mubr.f32.gmra.mxu0 %v586
    %v693 = vpop.f32.mrf.mxu0
    %v694 = vadd.f32 %v560, %v693
    %v695 = vpop.f32.mrf.mxu0
    %v696 = vadd.f32 %v560, %v695
    %697 = vmatprep.mubr.f32.mxu0 0.0
    %698 = vmatmul.mubr.f32.gmra.mxu0 %v589
    %v699 = vpop.f32.mrf.mxu0
    %v700 = vadd.f32 %v565, %v699
    %v701 = vpop.f32.mrf.mxu0
    %v702 = vadd.f32 %v565, %v701
    %703 = vdwg.mxu0
    %704 = vmatprep.subr.mxu0 0.0
    %705 = vmatpush1.msra.mxu0 0.0
    %706 = vmatprep.subr.mxu0 0.0
    %707 = vmatpush1.msra.mxu0 0.0
    %708 = vmatprep.subr.mxu0 0.0
    %709 = vmatpush1.msra.mxu0 0.0
    %710 = vmatprep.subr.mxu0 0.0
    %711 = vmatpush1.msra.mxu0 0.0
    %712 = vmatprep.subr.mxu0 0.0
    %713 = vmatpush1.msra.mxu0 0.0
    %714 = vmatprep.subr.mxu0 0.0
    %715 = vmatpush1.msra.mxu0 0.0
    %716 = vmatprep.subr.mxu0 0.0
    %717 = vmatpush1.msra.mxu0 0.0
    %718 = vmatprep.subr.mxu0 0.0
    %719 = vmatpush1.msra.mxu0 0.0
    %720 = vmatprep.subr.mxu0 0.0
    %721 = vmatpush1.msra.mxu0 %v510
    %722 = vmatprep.subr.mxu0 0.0
    %723 = vmatpush1.msra.mxu0 %v507
    %724 = vmatprep.subr.mxu0 0.0
    %725 = vmatpush1.msra.mxu0 %v504
    %726 = vmatprep.subr.mxu0 0.0
    %727 = vmatpush1.msra.mxu0 %v501
    %728 = vmatprep.subr.mxu0 0.0
    %729 = vmatpush1.msra.mxu0 %v498
    %730 = vmatprep.subr.mxu0 0.0
    %731 = vmatpush1.msra.mxu0 %v495
    %732 = vmatprep.subr.mxu0 0.0
    %733 = vmatpush1.msra.mxu0 %v492
    %734 = vmatprep.subr.mxu0 0.0
    %735 = vmatpush1.msra.mxu0 %v489
    %736 = vmatprep.subr.mxu0 0.0
    %737 = vmatpush2.msra.mxu0 0.0
    %738 = vmatprep.subr.mxu0 0.0
    %739 = vmatpush2.msra.mxu0 0.0
    %740 = vmatprep.subr.mxu0 0.0
    %741 = vmatpush2.msra.mxu0 0.0
    %742 = vmatprep.subr.mxu0 0.0
    %743 = vmatpush2.msra.mxu0 0.0
    %744 = vmatprep.subr.mxu0 0.0
    %745 = vmatpush2.msra.mxu0 0.0
    %746 = vmatprep.subr.mxu0 0.0
    %747 = vmatpush2.msra.mxu0 0.0
    %748 = vmatprep.subr.mxu0 0.0
    %749 = vmatpush2.msra.mxu0 0.0
    %750 = vmatprep.subr.mxu0 0.0
    %751 = vmatpush2.msra.mxu0 0.0
    %752 = vmatprep.subr.mxu0 0.0
    %753 = vmatpush2.msra.mxu0 0.0
    %754 = vmatprep.subr.mxu0 0.0
    %755 = vmatpush2.msra.mxu0 0.0
    %756 = vmatprep.subr.mxu0 0.0
    %757 = vmatpush2.msra.mxu0 0.0
    %758 = vmatprep.subr.mxu0 0.0
    %759 = vmatpush2.msra.mxu0 0.0
    %760 = vmatprep.subr.mxu0 0.0
    %761 = vmatpush2.msra.mxu0 0.0
    %762 = vmatprep.subr.mxu0 0.0
    %763 = vmatpush2.msra.mxu0 0.0
    %764 = vmatprep.subr.mxu0 0.0
    %765 = vmatpush2.msra.mxu0 0.0
    %766 = vmatprep.subr.mxu0 0.0
    %767 = vmatpush2.msra.mxu0 0.0
    %768 = vmatprep.mubr.f32.mxu0 0.0
    %769 = vmatmul.mubr.f32.gmra.mxu0 %v568
    %v770 = vpop.f32.mrf.mxu0
    %v771 = vadd.f32 %v530, %v770
    %v772 = vpop.f32.mrf.mxu0
    %773 = vmatprep.mubr.f32.mxu0 0.0
    %774 = vmatmul.mubr.f32.gmra.mxu0 %v571
    %v775 = vpop.f32.mrf.mxu0
    %v776 = vadd.f32 %v535, %v775
    %v777 = vpop.f32.mrf.mxu0
    %778 = vmatprep.mubr.f32.mxu0 0.0
    %779 = vmatmul.mubr.f32.gmra.mxu0 %v574
    %v780 = vpop.f32.mrf.mxu0
    %v781 = vadd.f32 %v540, %v780
    %v782 = vpop.f32.mrf.mxu0
    %783 = vmatprep.mubr.f32.mxu0 0.0
    %784 = vmatmul.mubr.f32.gmra.mxu0 %v577
    %v785 = vpop.f32.mrf.mxu0
    %v786 = vadd.f32 %v545, %v785
    %v787 = vpop.f32.mrf.mxu0
    %788 = vmatprep.mubr.f32.mxu0 0.0
    %789 = vmatmul.mubr.f32.gmra.mxu0 %v580
    %v790 = vpop.f32.mrf.mxu0
    %v791 = vadd.f32 %v550, %v790
    %v792 = vpop.f32.mrf.mxu0
    %793 = vmatprep.mubr.f32.mxu0 0.0
    %794 = vmatmul.mubr.f32.gmra.mxu0 %v583
    %v795 = vpop.f32.mrf.mxu0
    %v796 = vadd.f32 %v555, %v795
    %v797 = vpop.f32.mrf.mxu0
    %798 = vmatprep.mubr.f32.mxu0 0.0
    %799 = vmatmul.mubr.f32.gmra.mxu0 %v586
    %v800 = vpop.f32.mrf.mxu0
    %v801 = vadd.f32 %v560, %v800
    %v802 = vpop.f32.mrf.mxu0
    %803 = vmatprep.mubr.f32.mxu0 0.0
    %804 = vmatmul.mubr.f32.gmra.mxu0 %v589
    %v805 = vpop.f32.mrf.mxu0
    %v806 = vadd.f32 %v565, %v805
    %v807 = vpop.f32.mrf.mxu0
    %808 = vdwg.mxu0
    %vm809 = vcmp.gt.f32.partialorder %v658, 0.01
    %vm810 = vcmp.gt.f32.partialorder %v660, 0.01
    %vm811 = vcmp.gt.f32.partialorder %v771, 0.01
    %vm812 = vcmp.gt.f32.partialorder %v664, 0.01
    %vm813 = vcmp.gt.f32.partialorder %v666, 0.01
    %vm814 = vcmp.gt.f32.partialorder %v776, 0.01
    %vm815 = vcmp.gt.f32.partialorder %v670, 0.01
    %vm816 = vcmp.gt.f32.partialorder %v672, 0.01
    %vm817 = vcmp.gt.f32.partialorder %v781, 0.01
    %vm818 = vcmp.gt.f32.partialorder %v676, 0.01
    %vm819 = vcmp.gt.f32.partialorder %v678, 0.01
    %vm820 = vcmp.gt.f32.partialorder %v786, 0.01
    %vm821 = vcmp.gt.f32.partialorder %v682, 0.01
    %vm822 = vcmp.gt.f32.partialorder %v684, 0.01
    %vm823 = vcmp.gt.f32.partialorder %v791, 0.01
    %vm824 = vcmp.gt.f32.partialorder %v688, 0.01
    %vm825 = vcmp.gt.f32.partialorder %v690, 0.01
    %vm826 = vcmp.gt.f32.partialorder %v796, 0.01
    %vm827 = vcmp.gt.f32.partialorder %v694, 0.01
    %vm828 = vcmp.gt.f32.partialorder %v696, 0.01
    %vm829 = vcmp.gt.f32.partialorder %v801, 0.01
    %vm830 = vcmp.gt.f32.partialorder %v700, 0.01
    %vm831 = vcmp.gt.f32.partialorder %v702, 0.01
    %vm832 = vcmp.gt.f32.partialorder %v806, 0.01
    %v833 = vsub.f32 %v658, 0.01
    %v834 = vsub.f32 %v660, 0.01
    %v835 = vsub.f32 %v771, 0.01
    %v836 = vsub.f32 %v664, 0.01
    %v837 = vsub.f32 %v666, 0.01
    %v838 = vsub.f32 %v776, 0.01
    %v839 = vsub.f32 %v670, 0.01
    %v840 = vsub.f32 %v672, 0.01
    %v841 = vsub.f32 %v781, 0.01
    %v842 = vsub.f32 %v676, 0.01
    %v843 = vsub.f32 %v678, 0.01
    %v844 = vsub.f32 %v786, 0.01
    %v845 = vsub.f32 %v682, 0.01
    %v846 = vsub.f32 %v684, 0.01
    %v847 = vsub.f32 %v791, 0.01
    %v848 = vsub.f32 %v688, 0.01
    %v849 = vsub.f32 %v690, 0.01
    %v850 = vsub.f32 %v796, 0.01
    %v851 = vsub.f32 %v694, 0.01
    %v852 = vsub.f32 %v696, 0.01
    %v853 = vsub.f32 %v801, 0.01
    %v854 = vsub.f32 %v700, 0.01
    %v855 = vsub.f32 %v702, 0.01
    %v856 = vsub.f32 %v806, 0.01
    %vm857 = vcmp.lt.f32.partialorder %v658, -0.01
    %vm858 = vcmp.lt.f32.partialorder %v660, -0.01
    %vm859 = vcmp.lt.f32.partialorder %v771, -0.01
    %vm860 = vcmp.lt.f32.partialorder %v664, -0.01
    %vm861 = vcmp.lt.f32.partialorder %v666, -0.01
    %vm862 = vcmp.lt.f32.partialorder %v776, -0.01
    %vm863 = vcmp.lt.f32.partialorder %v670, -0.01
    %vm864 = vcmp.lt.f32.partialorder %v672, -0.01
    %vm865 = vcmp.lt.f32.partialorder %v781, -0.01
    %vm866 = vcmp.lt.f32.partialorder %v676, -0.01
    %vm867 = vcmp.lt.f32.partialorder %v678, -0.01
    %vm868 = vcmp.lt.f32.partialorder %v786, -0.01
    %vm869 = vcmp.lt.f32.partialorder %v682, -0.01
    %vm870 = vcmp.lt.f32.partialorder %v684, -0.01
    %vm871 = vcmp.lt.f32.partialorder %v791, -0.01
    %vm872 = vcmp.lt.f32.partialorder %v688, -0.01
    %vm873 = vcmp.lt.f32.partialorder %v690, -0.01
    %vm874 = vcmp.lt.f32.partialorder %v796, -0.01
    %vm875 = vcmp.lt.f32.partialorder %v694, -0.01
    %vm876 = vcmp.lt.f32.partialorder %v696, -0.01
    %vm877 = vcmp.lt.f32.partialorder %v801, -0.01
    %vm878 = vcmp.lt.f32.partialorder %v700, -0.01
    %vm879 = vcmp.lt.f32.partialorder %v702, -0.01
    %vm880 = vcmp.lt.f32.partialorder %v806, -0.01
    %v881 = vadd.f32 %v658, 0.01
    %v882 = vadd.f32 %v660, 0.01
    %v883 = vadd.f32 %v771, 0.01
    %v884 = vadd.f32 %v664, 0.01
    %v885 = vadd.f32 %v666, 0.01
    %v886 = vadd.f32 %v776, 0.01
    %v887 = vadd.f32 %v670, 0.01
    %v888 = vadd.f32 %v672, 0.01
    %v889 = vadd.f32 %v781, 0.01
    %v890 = vadd.f32 %v676, 0.01
    %v891 = vadd.f32 %v678, 0.01
    %v892 = vadd.f32 %v786, 0.01
    %v893 = vadd.f32 %v682, 0.01
    %v894 = vadd.f32 %v684, 0.01
    %v895 = vadd.f32 %v791, 0.01
    %v896 = vadd.f32 %v688, 0.01
    %v897 = vadd.f32 %v690, 0.01
    %v898 = vadd.f32 %v796, 0.01
    %v899 = vadd.f32 %v694, 0.01
    %v900 = vadd.f32 %v696, 0.01
    %v901 = vadd.f32 %v801, 0.01
    %v902 = vadd.f32 %v700, 0.01
    %v903 = vadd.f32 %v702, 0.01
    %v904 = vadd.f32 %v806, 0.01
    %v905 = vsel %vm857, %v881, 0.0
    %v906 = vsel %vm858, %v882, 0.0
    %v907 = vsel %vm859, %v883, 0.0
    %v908 = vsel %vm860, %v884, 0.0
    %v909 = vsel %vm861, %v885, 0.0
    %v910 = vsel %vm862, %v886, 0.0
    %v911 = vsel %vm863, %v887, 0.0
    %v912 = vsel %vm864, %v888, 0.0
    %v913 = vsel %vm865, %v889, 0.0
    %v914 = vsel %vm866, %v890, 0.0
    %v915 = vsel %vm867, %v891, 0.0
    %v916 = vsel %vm868, %v892, 0.0
    %v917 = vsel %vm869, %v893, 0.0
    %v918 = vsel %vm870, %v894, 0.0
    %v919 = vsel %vm871, %v895, 0.0
    %v920 = vsel %vm872, %v896, 0.0
    %v921 = vsel %vm873, %v897, 0.0
    %v922 = vsel %vm874, %v898, 0.0
    %v923 = vsel %vm875, %v899, 0.0
    %v924 = vsel %vm876, %v900, 0.0
    %v925 = vsel %vm877, %v901, 0.0
    %v926 = vsel %vm878, %v902, 0.0
    %v927 = vsel %vm879, %v903, 0.0
    %v928 = vsel %vm880, %v904, 0.0
    %v929 = vsel %vm809, %v833, %v905
    %v930 = vsel %vm810, %v834, %v906
    %v931 = vsel %vm811, %v835, %v907
    %v932 = vsel %vm812, %v836, %v908
    %v933 = vsel %vm813, %v837, %v909
    %v934 = vsel %vm814, %v838, %v910
    %v935 = vsel %vm815, %v839, %v911
    %v936 = vsel %vm816, %v840, %v912
    %v937 = vsel %vm817, %v841, %v913
    %v938 = vsel %vm818, %v842, %v914
    %v939 = vsel %vm819, %v843, %v915
    %v940 = vsel %vm820, %v844, %v916
    %v941 = vsel %vm821, %v845, %v917
    %v942 = vsel %vm822, %v846, %v918
    %v943 = vsel %vm823, %v847, %v919
    %v944 = vsel %vm824, %v848, %v920
    %v945 = vsel %vm825, %v849, %v921
    %v946 = vsel %vm826, %v850, %v922
    %v947 = vsel %vm827, %v851, %v923
    %v948 = vsel %vm828, %v852, %v924
    %v949 = vsel %vm829, %v853, %v925
    %v950 = vsel %vm830, %v854, %v926
    %v951 = vsel %vm831, %v855, %v927
    %v952 = vsel %vm832, %v856, %v928
    %953 = vst [vmem:[#allocation8] sm:$0xff] %v929
    %954 = vst [vmem:[#allocation8 + $0x8] sm:$0xff] %v930
    %955 = vst [vmem:[#allocation8 + $0x10] sm:$0xff] %v931
    %956 = vst [vmem:[#allocation8 + $0x18] sm:$0xff] %v932
    %957 = vst [vmem:[#allocation8 + $0x20] sm:$0xff] %v933
    %958 = vst [vmem:[#allocation8 + $0x28] sm:$0xff] %v934
    %959 = vst [vmem:[#allocation8 + $0x30] sm:$0xff] %v935
    %960 = vst [vmem:[#allocation8 + $0x38] sm:$0xff] %v936
    %961 = vst [vmem:[#allocation8 + $0x40] sm:$0xff] %v937
    %962 = vst [vmem:[#allocation8 + $0x48] sm:$0xff] %v938
    %963 = vst [vmem:[#allocation8 + $0x50] sm:$0xff] %v939
    %964 = vst [vmem:[#allocation8 + $0x58] sm:$0xff] %v940
    %965 = vst [vmem:[#allocation9] sm:$0xff] %v941
    %966 = vst [vmem:[#allocation9 + $0x8] sm:$0xff] %v942
    %967 = vst [vmem:[#allocation9 + $0x10] sm:$0xff] %v943
    %968 = vst [vmem:[#allocation9 + $0x18] sm:$0xff] %v944
    %969 = vst [vmem:[#allocation9 + $0x20] sm:$0xff] %v945
    %970 = vst [vmem:[#allocation9 + $0x28] sm:$0xff] %v946
    %971 = vst [vmem:[#allocation9 + $0x30] sm:$0xff] %v947
    %972 = vst [vmem:[#allocation9 + $0x38] sm:$0xff] %v948
    %973 = vst [vmem:[#allocation9 + $0x40] sm:$0xff] %v949
    %974 = vst [vmem:[#allocation9 + $0x48] sm:$0xff] %v950
    %975 = vst [vmem:[#allocation9 + $0x50] sm:$0xff] %v951
    %976 = vst [vmem:[#allocation9 + $0x58] sm:$0xff] %v952
    // Predicated region
    $region38: #{tpu_custom_call.1} parent=1 // pred_check
      _
    $region39: #{tpu_custom_call.1} parent=1 // pred_check_branch
      %978 = sbr.rel (0) target = $region41
    $region40: #{tpu_custom_call.1} parent=1 // pred_region
      %s980 = ssub.s32 1536, 1536
      %981 = vsyncadd [#allocation4], %s980
      %s982 = sshll.u32 [#allocation8], 4
      %s983 = int_to_ptr.vmem [resolvable:$true] %s982
      %988 = dma.vmem_to_hbm [thread:$0]  %s983, 1536, %s6, [#allocation4], 384, 384, 24
    $region41: #{tpu_custom_call.1} parent=1 // pred_fallthru
      _
    // Predicated region
    $region42: #{tpu_custom_call.1} parent=1 // pred_check
      _
    $region43: #{tpu_custom_call.1} parent=1 // pred_check_branch
      %990 = sbr.rel (0) target = $region45
    $region44: #{tpu_custom_call.1} parent=1 // pred_region
      %s992 = ssub.s32 1536, 1536
      %993 = vsyncadd [#allocation10], %s992
      %s994 = sshll.u32 [#allocation9], 4
      %s995 = int_to_ptr.vmem [resolvable:$true] %s994
      %1000 = dma.vmem_to_hbm [thread:$0]  %s995, 1536, %s7, [#allocation10], 384, 384, 24
    $region45: #{tpu_custom_call.1} parent=1 // pred_fallthru
      _
    // Predicated region
    $region46: #{tpu_custom_call.1} parent=1 // pred_check
      _
    $region47: #{tpu_custom_call.1} parent=1 // pred_check_branch
      %1002 = sbr.rel (0) target = $region49
    $region48: #{tpu_custom_call.1} parent=1 // pred_region
      %1003 = dma.done [#allocation4], 1536
    $region49: #{tpu_custom_call.1} parent=1 // pred_fallthru
      _
    // Predicated region
    $region50: #{tpu_custom_call.1} parent=1 // pred_check
      _
    $region51: #{tpu_custom_call.1} parent=1 // pred_check_branch
      %1005 = sbr.rel (0) target = $region53
    $region52: #{tpu_custom_call.1} parent=1 // pred_region
      %1006 = dma.done [#allocation10], 1536
    $region53: #{tpu_custom_call.1} parent=1 // pred_fallthru
      _
    %1007 = vsyncpa [#allocation3], 1
    %1008 = vsyncpa [#allocation6], 1
    %1009 = vsyncpa [#allocation4], 1
    %1010 = vsyncpa [#allocation10], 1

</llo_original>
